<compile_context>
chip_gen: v7x
topology: tpu7x:2x2x1
jax: 0.10.0
libtpu: 0.0.40
codegen_flags: <defaults>
</compile_context>

<pallas_src>
import jax
import jax.numpy as jnp
from jax.experimental import pallas as pl
from jax.experimental.pallas import tpu as pltpu


def _attention_kernel(hist_ref, prev_ref, ctx_ref, attn_ref):
    # hist_ref block: (Bt, T, H); prev_ref block: (Bt, H)
    h = hist_ref[...].astype(jnp.float32)         # keep all math in f32
    p = prev_ref[...].astype(jnp.float32)

    # scores (Bt, T): broadcast-multiply over H + lane reduce (VPU + XLU)
    s = jnp.sum(h * p[:, None, :], axis=-1)

    # numerically-stable softmax over the time axis
    m = jnp.max(s, axis=-1, keepdims=True)
    e = jnp.exp(s - m)
    denom = jnp.sum(e, axis=-1, keepdims=True)
    inv = pl.reciprocal(denom, approx=True)       # EUP slot (nearly free)
    inv = inv * (2.0 - denom * inv)               # one Newton step -> f32-accurate
    w = e * inv                                   # (Bt, T)

    # context (Bt, H): broadcast-multiply over T + sublane reduce
    ctx = jnp.sum(h * w[:, :, None], axis=1)

    attn_ref[...] = w.astype(attn_ref.dtype)
    ctx_ref[...] = ctx.astype(ctx_ref.dtype)


def attention_forward(hist_h, prev_h, *, block_b=None):
    """hist_h: (B, T, H), prev_h: (B, H, 1) -> (context (B, H), attn (B, T))."""
    B, T, H = hist_h.shape
    assert prev_h.shape == (B, H, 1), prev_h.shape
    prev = prev_h.reshape(B, H)                   # drop trailing size-1 dim

    dtype = hist_h.dtype
    itemsize = jnp.dtype(dtype).itemsize

    if block_b is None:
        # ~8 MiB hist block (double-buffered -> ~16 MiB), safe on v5e/v6e/v7x VMEM.
        budget = 8 * 1024 * 1024
        per_row = max(T * H * itemsize, 1)
        block_b = min(512, max(8, budget // per_row))
    block_b = max(8, (block_b // 8) * 8)          # sublane-dense output rows
    block_b = min(block_b, ((B + 7) // 8) * 8)    # don't over-pad tiny batches

    Bp = pl.cdiv(B, block_b) * block_b
    if Bp != B:
        pad = Bp - B
        hist_h = jnp.pad(hist_h, ((0, pad), (0, 0), (0, 0)))
        prev = jnp.pad(prev, ((0, pad), (0, 0)))

    ctx, attn = pl.pallas_call(
        _attention_kernel,
        out_shape=(
            jax.ShapeDtypeStruct((Bp, H), dtype),
            jax.ShapeDtypeStruct((Bp, T), dtype),
        ),
        grid=(Bp // block_b,),
        in_specs=[
            pl.BlockSpec((block_b, T, H), lambda b: (b, 0, 0)),
            pl.BlockSpec((block_b, H), lambda b: (b, 0)),
        ],
        out_specs=(
            pl.BlockSpec((block_b, H), lambda b: (b, 0)),
            pl.BlockSpec((block_b, T), lambda b: (b, 0)),
        ),
        compiler_params=pltpu.CompilerParams(
            dimension_semantics=("parallel",),
            vmem_limit_bytes=32 * 1024 * 1024,
        ),
    )(hist_h, prev)
    return ctx[:B], attn[:B]


def _reference(hist_h, prev_h):
    scores = jnp.einsum("bth,bhk->bt", hist_h, prev_h)
    attn = jax.nn.softmax(scores, axis=1)
    ctx = jnp.einsum("bth,bt->bh", hist_h, attn)
    return ctx, attn


if __name__ == "__main__":
    key = jax.random.PRNGKey(0)

    # shapes consistent with the module: batch=2, seq=8, hidden=32
    B, T, H = 2, 8, 32
    k1, k2 = jax.random.split(key)
    hist_h = jax.random.normal(k1, (B, T, H), dtype=jnp.float32)
    prev_h = jax.random.normal(k2, (B, H, 1), dtype=jnp.float32)

    context, attn_weights = attention_forward(hist_h, prev_h)
    jax.block_until_ready((context, attn_weights))

    ctx_ref, attn_ref = _reference(hist_h, prev_h)
    assert context.shape == (B, H) and attn_weights.shape == (B, T)
    assert jnp.allclose(attn_weights, attn_ref, rtol=1e-5, atol=1e-5)
    assert jnp.allclose(context, ctx_ref, rtol=1e-5, atol=1e-5)

    # exercise the multi-block grid + batch-padding path as well
    B2, T2, H2 = 37, 16, 128
    k3, k4 = jax.random.split(k2)
    hist2 = jax.random.normal(k3, (B2, T2, H2), dtype=jnp.float32)
    prev2 = jax.random.normal(k4, (B2, H2, 1), dtype=jnp.float32)
    ctx2, attn2 = attention_forward(hist2, prev2, block_b=8)
    jax.block_until_ready((ctx2, attn2))
    ctx2_ref, attn2_ref = _reference(hist2, prev2)
    assert jnp.allclose(attn2, attn2_ref, rtol=1e-5, atol=1e-5)
    assert jnp.allclose(ctx2, ctx2_ref, rtol=1e-5, atol=1e-5)

    print("KERNEL_OK")
</pallas_src>

<mosaic_0001>
module attributes {stable_mosaic.version = 11 : i64} {
  func.func @_attention_kernel(%arg0: i32, %arg1: memref<8x8x32xf32, #tpu.memory_space<vmem>>, %arg2: memref<8x32xf32, #tpu.memory_space<vmem>>, %arg3: memref<8x32xf32, #tpu.memory_space<vmem>>, %arg4: memref<8x8xf32, #tpu.memory_space<vmem>>) attributes {dimension_semantics = [#tpu.dimension_semantics<parallel>], iteration_bounds = array<i64: 1>, scalar_prefetch = 0 : i64, scratch_operands = 0 : i64, tpu.core_type = #tpu.core_type<tc>, window_params = [{transform_indices = @transform_0, window_bounds = array<i64: 8, 8, 32>}, {transform_indices = @transform_1, window_bounds = array<i64: 8, 32>}, {transform_indices = @transform_2, window_bounds = array<i64: 8, 32>}, {transform_indices = @transform_3, window_bounds = array<i64: 8, 8>}]} {
    %c0 = arith.constant 0 : index
    %c0_0 = arith.constant 0 : index
    %c0_1 = arith.constant 0 : index
    %0 = vector.load %arg1[%c0, %c0_0, %c0_1] : memref<8x8x32xf32, #tpu.memory_space<vmem>>, vector<8x8x32xf32>
    %c0_2 = arith.constant 0 : index
    %c0_3 = arith.constant 0 : index
    %1 = vector.load %arg2[%c0_2, %c0_3] : memref<8x32xf32, #tpu.memory_space<vmem>>, vector<8x32xf32>
    %2 = vector.shape_cast %1 : vector<8x32xf32> to vector<8x1x32xf32>
    %3 = vector.broadcast %2 : vector<8x1x32xf32> to vector<8x8x32xf32>
    %4 = arith.mulf %0, %3 : vector<8x8x32xf32>
    %cst = arith.constant dense<0.000000e+00> : vector<8x8xf32>
    %5 = vector.multi_reduction <add>, %4, %cst [2] : vector<8x8x32xf32> to vector<8x8xf32>
    %cst_4 = arith.constant dense<0xFF800000> : vector<8xf32>
    %6 = vector.multi_reduction <maximumf>, %5, %cst_4 [1] : vector<8x8xf32> to vector<8xf32>
    %7 = vector.shape_cast %6 : vector<8xf32> to vector<8x1xf32>
    %8 = vector.broadcast %7 : vector<8x1xf32> to vector<8x8xf32>
    %9 = arith.subf %5, %8 : vector<8x8xf32>
    %10 = math.exp %9 : vector<8x8xf32>
    %cst_5 = arith.constant dense<0.000000e+00> : vector<8xf32>
    %11 = vector.multi_reduction <add>, %10, %cst_5 [1] : vector<8x8xf32> to vector<8xf32>
    %12 = vector.shape_cast %11 : vector<8xf32> to vector<8x1xf32>
    %13 = tpu.reciprocal %12 {approx = true} : vector<8x1xf32> -> vector<8x1xf32>
    %14 = arith.mulf %12, %13 : vector<8x1xf32>
    %cst_6 = arith.constant 2.000000e+00 : f32
    %15 = vector.broadcast %cst_6 : f32 to vector<8x1xf32>
    %16 = arith.subf %15, %14 : vector<8x1xf32>
    %17 = arith.mulf %13, %16 : vector<8x1xf32>
    %18 = vector.broadcast %17 : vector<8x1xf32> to vector<8x8xf32>
    %19 = arith.mulf %10, %18 : vector<8x8xf32>
    %20 = vector.shape_cast %19 : vector<8x8xf32> to vector<8x8x1xf32>
    %21 = vector.broadcast %20 : vector<8x8x1xf32> to vector<8x8x32xf32>
    %22 = arith.mulf %0, %21 : vector<8x8x32xf32>
    %cst_7 = arith.constant dense<0.000000e+00> : vector<8x32xf32>
    %23 = vector.multi_reduction <add>, %22, %cst_7 [1] : vector<8x8x32xf32> to vector<8x32xf32>
    %c0_8 = arith.constant 0 : index
    %c0_9 = arith.constant 0 : index
    %24 = vector.load %arg4[%c0_8, %c0_9] : memref<8x8xf32, #tpu.memory_space<vmem>>, vector<8x8xf32>
    tpu.vector_store %arg4[%c0_8, %c0_9], %19 {strides = array<i32>} : memref<8x8xf32, #tpu.memory_space<vmem>>, vector<8x8xf32>,
    %c0_10 = arith.constant 0 : index
    %c0_11 = arith.constant 0 : index
    %25 = vector.load %arg3[%c0_10, %c0_11] : memref<8x32xf32, #tpu.memory_space<vmem>>, vector<8x32xf32>
    tpu.vector_store %arg3[%c0_10, %c0_11], %23 {strides = array<i32>} : memref<8x32xf32, #tpu.memory_space<vmem>>, vector<8x32xf32>,
    return
  }
  func.func @transform_0(%arg0: i32) -> (i32, i32, i32) {
    %c0_i32 = arith.constant 0 : i32
    %c0_i32_0 = arith.constant 0 : i32
    %c0_i32_1 = arith.constant 0 : i32
    return %arg0, %c0_i32, %c0_i32_0 : i32, i32, i32
  }
  func.func @transform_1(%arg0: i32) -> (i32, i32) {
    %c0_i32 = arith.constant 0 : i32
    %c0_i32_0 = arith.constant 0 : i32
    return %arg0, %c0_i32 : i32, i32
  }
  func.func @transform_2(%arg0: i32) -> (i32, i32) {
    %c0_i32 = arith.constant 0 : i32
    %c0_i32_0 = arith.constant 0 : i32
    return %arg0, %c0_i32 : i32, i32
  }
  func.func @transform_3(%arg0: i32) -> (i32, i32) {
    %c0_i32 = arith.constant 0 : i32
    %c0_i32_0 = arith.constant 0 : i32
    return %arg0, %c0_i32 : i32, i32
  }
}

</mosaic_0001>

<llo_original>
// kernel: tpu_custom_call.1
$region0: #{tpu_custom_call.1}
  #allocation0 [shape = 'u32[]', space=smem, size = 0x4, offset = 0x4, fixed_abs, tag = 'smem constant byte address 0x4 - core index']
  #allocation1 [shape = 'u32[144,128]{1,0:T(1,128)}', space=vmem, size = 0x12000, scoped, tag = 'internal scratch']
  %s0 = inlined_call_operand.hbm [shape: f32[8,8,32], index: 0, kind: input, shape index: {}]
  %s1 = inlined_call_operand.hbm [shape: f32[8,32], index: 1, kind: input, shape index: {}]
  %s2 = inlined_call_operand.hbm [shape: f32[8,32], index: 2, kind: output, shape index: {0}]
  %s3 = inlined_call_operand.hbm [shape: f32[8,8], index: 3, kind: output, shape index: {1}]
  %4 = xla_tuple %s2, %s3
  %s5 = sld [smem:[#allocation0]]
  $region34: #{tpu_custom_call.1} parent=0
    _
  %s7 = ssub.s32 1, %s5
  %s8 = scalar_select 0, %s7, %s5
  $region1: #{tpu_custom_call.1} parent=0
    #allocation2 [shape = 'u8[32768]{0}', space=vmem, size = 0x8000, scoped, tag = 'input window, operand 0, single buffered']
    #allocation3 [shape = 's32[1]{0}', space=sflag, size = 0x4, scoped, tag = 'scoped memory for tpu_custom_call.1']
    #allocation4 [shape = 's32[1]{0}', space=sflag, size = 0x4, scoped, tag = 'scoped memory for tpu_custom_call.1']
    #allocation5 [shape = 'u8[4096]{0}', space=vmem, size = 0x1000, scoped, tag = 'input window, operand 1, single buffered']
    #allocation6 [shape = 's32[1]{0}', space=sflag, size = 0x4, scoped, tag = 'scoped memory for tpu_custom_call.1']
    #allocation7 [shape = 'u8[4096]{0}', space=vmem, size = 0x1000, scoped, tag = 'output window, operand 0, single buffered']
    #allocation8 [shape = 'u8[4096]{0}', space=vmem, size = 0x1000, scoped, tag = 'output window, operand 1, single buffered']
    #allocation9 [shape = 's32[1]{0}', space=sflag, size = 0x4, scoped, tag = 'scoped memory for tpu_custom_call.1']
    %9 = vsyncpa [#allocation3], 0
    %10 = vsyncpa [#allocation6], 0
    %11 = vsyncpa [#allocation4], 0
    %12 = vsyncpa [#allocation9], 0
    // Predicated region
    $region2: #{tpu_custom_call.1} parent=1 // pred_check
      _
    $region3: #{tpu_custom_call.1} parent=1 // pred_check_branch
      %14 = sbr.rel (0) target = $region5
    $region4: #{tpu_custom_call.1} parent=1 // pred_region
      %s16 = ssub.s32 1024, 1024
      %17 = vsyncadd [#allocation3], %s16
      %s18 = sshll.u32 [#allocation2], 4
      %s19 = int_to_ptr.vmem [resolvable:$true] %s18
      %24 = dma.hbm_to_vmem [thread:$0]  %s0, 1024, %s19, [#allocation3], 128, 128, 8
    $region5: #{tpu_custom_call.1} parent=1 // pred_fallthru
      _
    // Predicated region
    $region6: #{tpu_custom_call.1} parent=1 // pred_check
      _
    $region7: #{tpu_custom_call.1} parent=1 // pred_check_branch
      %26 = sbr.rel (0) target = $region9
    $region8: #{tpu_custom_call.1} parent=1 // pred_region
      %s28 = ssub.s32 128, 128
      %29 = vsyncadd [#allocation6], %s28
      %s31 = sshll.u32 [#allocation5], 4
      %s32 = int_to_ptr.vmem [resolvable:$true] %s31
      %34 = dma.hbm_to_vmem [thread:$0]  %s1, 128, %s32, [#allocation6]
    $region9: #{tpu_custom_call.1} parent=1 // pred_fallthru
      _
    // Predicated region
    $region10: #{tpu_custom_call.1} parent=1 // pred_check
      _
    $region11: #{tpu_custom_call.1} parent=1 // pred_check_branch
      %36 = sbr.rel (0) target = $region13
    $region12: #{tpu_custom_call.1} parent=1 // pred_region
      %37 = dma.done [#allocation3], 1024
    $region13: #{tpu_custom_call.1} parent=1 // pred_fallthru
      _
    // Predicated region
    $region14: #{tpu_custom_call.1} parent=1 // pred_check
      _
    $region15: #{tpu_custom_call.1} parent=1 // pred_check_branch
      %39 = sbr.rel (0) target = $region17
    $region16: #{tpu_custom_call.1} parent=1 // pred_region
      %40 = dma.done [#allocation6], 128
    $region17: #{tpu_custom_call.1} parent=1 // pred_fallthru
      _
    %v41 = vld [vmem:[#allocation2] sm:$0xff]
    %v42 = vld [vmem:[#allocation2 + $0x8] sm:$0xff]
    %v43 = vld [vmem:[#allocation2 + $0x10] sm:$0xff]
    %v44 = vld [vmem:[#allocation2 + $0x18] sm:$0xff]
    %v45 = vld [vmem:[#allocation2 + $0x20] sm:$0xff]
    %v46 = vld [vmem:[#allocation2 + $0x28] sm:$0xff]
    %v47 = vld [vmem:[#allocation2 + $0x30] sm:$0xff]
    %v48 = vld [vmem:[#allocation2 + $0x38] sm:$0xff]
    %v49 = vld [vmem:[#allocation5] sm:$0xff]
    %v51 = vcombine.high %v49, %v49
    %v53 = vunpack.c.l.s4 1966171168
    %v54 = vunpack.c.0.s8 %v53
    %v55 = vlaneseq
    %v56 = vshrl.u32 %v55, 7
    %v57 = vsub.s32 %v54, %v56
    %v58 = vrot.slane %v49, %v57
    %v60 = vunpack.c.l.s4 1966171168
    %v61 = vunpack.c.0.s8 %v60
    %v62 = vlaneseq
    %v63 = vshrl.u32 %v62, 7
    %v64 = vsub.s32 %v61, %v63
    %v65 = vrot.slane %v51, %v64
    %v66 = vcombine.high %v58, %v58
    %v67 = vcombine.high %v65, %v65
    %v69 = vunpack.c.l.s4 1966171168
    %v70 = vunpack.c.0.s8 %v69
    %v71 = vlaneseq
    %v72 = vshrl.u32 %v71, 7
    %v73 = vsub.s32 %v70, %v72
    %v74 = vrot.slane %v58, %v73
    %v76 = vunpack.c.l.s4 1966171168
    %v77 = vunpack.c.0.s8 %v76
    %v78 = vlaneseq
    %v79 = vshrl.u32 %v78, 7
    %v80 = vsub.s32 %v77, %v79
    %v81 = vrot.slane %v65, %v80
    %v83 = vunpack.c.l.s4 1966171168
    %v84 = vunpack.c.0.s8 %v83
    %v85 = vlaneseq
    %v86 = vshrl.u32 %v85, 7
    %v87 = vsub.s32 %v84, %v86
    %v88 = vrot.slane %v66, %v87
    %v90 = vunpack.c.l.s4 1966171168
    %v91 = vunpack.c.0.s8 %v90
    %v92 = vlaneseq
    %v93 = vshrl.u32 %v92, 7
    %v94 = vsub.s32 %v91, %v93
    %v95 = vrot.slane %v67, %v94
    %v96 = vcombine.high %v74, %v74
    %v97 = vcombine.high %v81, %v81
    %v98 = vcombine.high %v88, %v88
    %v99 = vcombine.high %v95, %v95
    %v100 = vlaneseq
    %v101 = vshrl.u32 %v100, 7
    %v102 = vsub.s32 0, %v101
    %v103 = vrot.slane %v74, %v102
    %v104 = vlaneseq
    %v105 = vshrl.u32 %v104, 7
    %v106 = vsub.s32 0, %v105
    %v107 = vrot.slane %v88, %v106
    %v108 = vlaneseq
    %v109 = vshrl.u32 %v108, 7
    %v110 = vsub.s32 0, %v109
    %v111 = vrot.slane %v96, %v110
    %v112 = vlaneseq
    %v113 = vshrl.u32 %v112, 7
    %v114 = vsub.s32 0, %v113
    %v115 = vrot.slane %v98, %v114
    %v116 = vlaneseq
    %v117 = vshrl.u32 %v116, 7
    %v118 = vsub.s32 0, %v117
    %v119 = vrot.slane %v81, %v118
    %v120 = vlaneseq
    %v121 = vshrl.u32 %v120, 7
    %v122 = vsub.s32 0, %v121
    %v123 = vrot.slane %v95, %v122
    %v124 = vlaneseq
    %v125 = vshrl.u32 %v124, 7
    %v126 = vsub.s32 0, %v125
    %v127 = vrot.slane %v97, %v126
    %v128 = vlaneseq
    %v129 = vshrl.u32 %v128, 7
    %v130 = vsub.s32 0, %v129
    %v131 = vrot.slane %v99, %v130
    %v140 = vmul.f32 %v41, %v103
    %v141 = vmul.f32 %v42, %v107
    %v142 = vmul.f32 %v43, %v111
    %v143 = vmul.f32 %v44, %v115
    %v144 = vmul.f32 %v45, %v119
    %v145 = vmul.f32 %v46, %v123
    %v146 = vmul.f32 %v47, %v127
    %v147 = vmul.f32 %v48, %v131
    %vm148 = vcmask 261120
    %v149 = vsel %vm148, %v140, 0.0
    %150 = vadd.xlane.f32.xlu0 %v149
    %v151 = vpop.xlane.xlu0 %150
    %v152 = vsel %vm148, %v141, 0.0
    %153 = vadd.xlane.f32.xlu0 %v152
    %v154 = vpop.xlane.xlu0 %153
    %v155 = vsel %vm148, %v142, 0.0
    %156 = vadd.xlane.f32.xlu0 %v155
    %v157 = vpop.xlane.xlu0 %156
    %v158 = vsel %vm148, %v143, 0.0
    %159 = vadd.xlane.f32.xlu0 %v158
    %v160 = vpop.xlane.xlu0 %159
    %v161 = vsel %vm148, %v144, 0.0
    %162 = vadd.xlane.f32.xlu0 %v161
    %v163 = vpop.xlane.xlu0 %162
    %v164 = vsel %vm148, %v145, 0.0
    %165 = vadd.xlane.f32.xlu0 %v164
    %v166 = vpop.xlane.xlu0 %165
    %v167 = vsel %vm148, %v146, 0.0
    %168 = vadd.xlane.f32.xlu0 %v167
    %v169 = vpop.xlane.xlu0 %168
    %v170 = vsel %vm148, %v147, 0.0
    %171 = vadd.xlane.f32.xlu0 %v170
    %v172 = vpop.xlane.xlu0 %171
    %v181 = vlaneseq
    %v182 = vand.u32 %v181, 127
    %v183 = vlaneseq
    %v184 = vshrl.u32 %v183, 7
    %v185 = vsub.s32 %v182, %v184
    %v186 = vrot.slane %v151, %v185
    %v187 = vlaneseq
    %v188 = vshrl.u32 %v187, 7
    %v189 = vsub.s32 %v182, %v188
    %v190 = vrot.slane %v154, %v189
    %v191 = vlaneseq
    %v192 = vshrl.u32 %v191, 7
    %v193 = vsub.s32 %v182, %v192
    %v194 = vrot.slane %v157, %v193
    %v195 = vlaneseq
    %v196 = vshrl.u32 %v195, 7
    %v197 = vsub.s32 %v182, %v196
    %v198 = vrot.slane %v160, %v197
    %v199 = vlaneseq
    %v200 = vshrl.u32 %v199, 7
    %v201 = vsub.s32 %v182, %v200
    %v202 = vrot.slane %v163, %v201
    %v203 = vlaneseq
    %v204 = vshrl.u32 %v203, 7
    %v205 = vsub.s32 %v182, %v204
    %v206 = vrot.slane %v166, %v205
    %v207 = vlaneseq
    %v208 = vshrl.u32 %v207, 7
    %v209 = vsub.s32 %v182, %v208
    %v210 = vrot.slane %v169, %v209
    %v211 = vlaneseq
    %v212 = vshrl.u32 %v211, 7
    %v213 = vsub.s32 %v182, %v212
    %v214 = vrot.slane %v172, %v213
    %vm215 = vcmask 1041409
    %v216 = vsel %vm215, %v190, %v186
    %vm217 = vcmask 1042434
    %v218 = vsel %vm217, %v194, %v216
    %vm219 = vcmask 1043459
    %v220 = vsel %vm219, %v198, %v218
    %vm221 = vcmask 1044484
    %v222 = vsel %vm221, %v202, %v220
    %vm223 = vcmask 1045509
    %v224 = vsel %vm223, %v206, %v222
    %vm225 = vcmask 1046534
    %v226 = vsel %vm225, %v210, %v224
    %vm227 = vcmask 1047559
    %v228 = vsel %vm227, %v214, %v226
    %vm230 = vcmask 64512
    %v231 = vsel %vm230, %v228, -inf
    %232 = vmax.xlane.f32.xlu0 %v231
    %v233 = vpop.xlane.xlu0 %232
    %v235 = vlaneseq
    %v236 = vshrl.u32 %v235, 7
    %v237 = vsub.s32 0, %v236
    %v238 = vrot.slane %v233, %v237
    %v239 = vlaneseq
    %v240 = vshrl.u32 %v239, 7
    %v241 = vsub.s32 1, %v240
    %v242 = vrot.slane %v233, %v241
    %v243 = vlaneseq
    %v244 = vshrl.u32 %v243, 7
    %v245 = vsub.s32 2, %v244
    %v246 = vrot.slane %v233, %v245
    %v247 = vlaneseq
    %v248 = vshrl.u32 %v247, 7
    %v249 = vsub.s32 3, %v248
    %v250 = vrot.slane %v233, %v249
    %v251 = vlaneseq
    %v252 = vshrl.u32 %v251, 7
    %v253 = vsub.s32 4, %v252
    %v254 = vrot.slane %v233, %v253
    %v255 = vlaneseq
    %v256 = vshrl.u32 %v255, 7
    %v257 = vsub.s32 5, %v256
    %v258 = vrot.slane %v233, %v257
    %v259 = vlaneseq
    %v260 = vshrl.u32 %v259, 7
    %v261 = vsub.s32 6, %v260
    %v262 = vrot.slane %v233, %v261
    %v263 = vlaneseq
    %v264 = vshrl.u32 %v263, 7
    %v265 = vsub.s32 7, %v264
    %v266 = vrot.slane %v233, %v265
    %v275 = vsub.f32 %v151, %v238
    %v276 = vsub.f32 %v154, %v242
    %v277 = vsub.f32 %v157, %v246
    %v278 = vsub.f32 %v160, %v250
    %v279 = vsub.f32 %v163, %v254
    %v280 = vsub.f32 %v166, %v258
    %v281 = vsub.f32 %v169, %v262
    %v282 = vsub.f32 %v172, %v266
    %v283 = vmul.f32 %v275, 1.442695
    %v284 = vpow.pop %v283
    %v285 = vmul.f32 %v276, 1.442695
    %v286 = vpow.pop %v285
    %v287 = vmul.f32 %v277, 1.442695
    %v288 = vpow.pop %v287
    %v289 = vmul.f32 %v278, 1.442695
    %v290 = vpow.pop %v289
    %v291 = vmul.f32 %v279, 1.442695
    %v292 = vpow.pop %v291
    %v293 = vmul.f32 %v280, 1.442695
    %v294 = vpow.pop %v293
    %v295 = vmul.f32 %v281, 1.442695
    %v296 = vpow.pop %v295
    %v297 = vmul.f32 %v282, 1.442695
    %v298 = vpow.pop %v297
    %307 = vset.pattern.permute.xlu0 0
    %308 = vperm.xlu0 %307, %v284
    %v309 = vpop.permute.xlu0 %308
    %310 = vset.pattern.permute.xlu0 0
    %311 = vperm.xlu0 %310, %v286
    %v312 = vpop.permute.xlu0 %311
    %313 = vset.pattern.permute.xlu0 0
    %314 = vperm.xlu0 %313, %v288
    %v315 = vpop.permute.xlu0 %314
    %316 = vset.pattern.permute.xlu0 0
    %317 = vperm.xlu0 %316, %v290
    %v318 = vpop.permute.xlu0 %317
    %319 = vset.pattern.permute.xlu0 0
    %320 = vperm.xlu0 %319, %v292
    %v321 = vpop.permute.xlu0 %320
    %322 = vset.pattern.permute.xlu0 0
    %323 = vperm.xlu0 %322, %v294
    %v324 = vpop.permute.xlu0 %323
    %325 = vset.pattern.permute.xlu0 0
    %326 = vperm.xlu0 %325, %v296
    %v327 = vpop.permute.xlu0 %326
    %328 = vset.pattern.permute.xlu0 0
    %329 = vperm.xlu0 %328, %v298
    %v330 = vpop.permute.xlu0 %329
    %v331 = vlaneseq
    %v332 = vshrl.u32 %v331, 7
    %v333 = vsub.s32 %v182, %v332
    %v334 = vrot.slane %v309, %v333
    %v335 = vlaneseq
    %v336 = vshrl.u32 %v335, 7
    %v337 = vsub.s32 %v182, %v336
    %v338 = vrot.slane %v312, %v337
    %v339 = vlaneseq
    %v340 = vshrl.u32 %v339, 7
    %v341 = vsub.s32 %v182, %v340
    %v342 = vrot.slane %v315, %v341
    %v343 = vlaneseq
    %v344 = vshrl.u32 %v343, 7
    %v345 = vsub.s32 %v182, %v344
    %v346 = vrot.slane %v318, %v345
    %v347 = vlaneseq
    %v348 = vshrl.u32 %v347, 7
    %v349 = vsub.s32 %v182, %v348
    %v350 = vrot.slane %v321, %v349
    %v351 = vlaneseq
    %v352 = vshrl.u32 %v351, 7
    %v353 = vsub.s32 %v182, %v352
    %v354 = vrot.slane %v324, %v353
    %v355 = vlaneseq
    %v356 = vshrl.u32 %v355, 7
    %v357 = vsub.s32 %v182, %v356
    %v358 = vrot.slane %v327, %v357
    %v359 = vlaneseq
    %v360 = vshrl.u32 %v359, 7
    %v361 = vsub.s32 %v182, %v360
    %v362 = vrot.slane %v330, %v361
    %v363 = vsel %vm215, %v338, %v334
    %v364 = vsel %vm217, %v342, %v363
    %v365 = vsel %vm219, %v346, %v364
    %v366 = vsel %vm221, %v350, %v365
    %v367 = vsel %vm223, %v354, %v366
    %v368 = vsel %vm225, %v358, %v367
    %v369 = vsel %vm227, %v362, %v368
    %v371 = vsel %vm230, %v369, 0.0
    %372 = vadd.xlane.f32.xlu0 %v371
    %v373 = vpop.xlane.xlu0 %372
    %v374 = vrcp.pop %v373
    %v375 = vmul.f32 %v373, %v374
    %v376 = vsub.f32 2.0, %v375
    %v377 = vmul.f32 %v374, %v376
    %v379 = vlaneseq
    %v380 = vshrl.u32 %v379, 7
    %v381 = vsub.s32 0, %v380
    %v382 = vrot.slane %v377, %v381
    %v383 = vlaneseq
    %v384 = vshrl.u32 %v383, 7
    %v385 = vsub.s32 1, %v384
    %v386 = vrot.slane %v377, %v385
    %v387 = vlaneseq
    %v388 = vshrl.u32 %v387, 7
    %v389 = vsub.s32 2, %v388
    %v390 = vrot.slane %v377, %v389
    %v391 = vlaneseq
    %v392 = vshrl.u32 %v391, 7
    %v393 = vsub.s32 3, %v392
    %v394 = vrot.slane %v377, %v393
    %v395 = vlaneseq
    %v396 = vshrl.u32 %v395, 7
    %v397 = vsub.s32 4, %v396
    %v398 = vrot.slane %v377, %v397
    %v399 = vlaneseq
    %v400 = vshrl.u32 %v399, 7
    %v401 = vsub.s32 5, %v400
    %v402 = vrot.slane %v377, %v401
    %v403 = vlaneseq
    %v404 = vshrl.u32 %v403, 7
    %v405 = vsub.s32 6, %v404
    %v406 = vrot.slane %v377, %v405
    %v407 = vlaneseq
    %v408 = vshrl.u32 %v407, 7
    %v409 = vsub.s32 7, %v408
    %v410 = vrot.slane %v377, %v409
    %v419 = vmul.f32 %v284, %v382
    %v420 = vmul.f32 %v286, %v386
    %v421 = vmul.f32 %v288, %v390
    %v422 = vmul.f32 %v290, %v394
    %v423 = vmul.f32 %v292, %v398
    %v424 = vmul.f32 %v294, %v402
    %v425 = vmul.f32 %v296, %v406
    %v426 = vmul.f32 %v298, %v410
    %428 = vset.pattern.permute.xlu0 0
    %429 = vperm.xlu0 %428, %v419
    %v430 = vpop.permute.xlu0 %429
    %433 = vset.pattern.permute.xlu0 0
    %434 = vperm.xlu0 %433, %v420
    %v435 = vpop.permute.xlu0 %434
    %438 = vset.pattern.permute.xlu0 0
    %439 = vperm.xlu0 %438, %v421
    %v440 = vpop.permute.xlu0 %439
    %443 = vset.pattern.permute.xlu0 0
    %444 = vperm.xlu0 %443, %v422
    %v445 = vpop.permute.xlu0 %444
    %448 = vset.pattern.permute.xlu0 0
    %449 = vperm.xlu0 %448, %v423
    %v450 = vpop.permute.xlu0 %449
    %453 = vset.pattern.permute.xlu0 0
    %454 = vperm.xlu0 %453, %v424
    %v455 = vpop.permute.xlu0 %454
    %458 = vset.pattern.permute.xlu0 0
    %459 = vperm.xlu0 %458, %v425
    %v460 = vpop.permute.xlu0 %459
    %463 = vset.pattern.permute.xlu0 0
    %464 = vperm.xlu0 %463, %v426
    %v465 = vpop.permute.xlu0 %464
    %v467 = vmul.f32 %v41, %v430
    %v468 = vmul.f32 %v42, %v435
    %v469 = vmul.f32 %v43, %v440
    %v470 = vmul.f32 %v44, %v445
    %v471 = vmul.f32 %v45, %v450
    %v472 = vmul.f32 %v46, %v455
    %v473 = vmul.f32 %v47, %v460
    %v474 = vmul.f32 %v48, %v465
    %v475 = vsel %vm148, %v467, 0.0
    %v476 = vrot.slane %v475, 4
    %v477 = vadd.f32 %v475, %v476
    %v478 = vrot.slane %v477, 2
    %v479 = vadd.f32 %v477, %v478
    %v480 = vrot.slane %v479, 1
    %v481 = vadd.f32 %v479, %v480
    %v482 = vsel %vm148, %v468, 0.0
    %v483 = vrot.slane %v482, 4
    %v484 = vadd.f32 %v482, %v483
    %v485 = vrot.slane %v484, 2
    %v486 = vadd.f32 %v484, %v485
    %v487 = vrot.slane %v486, 1
    %v488 = vadd.f32 %v486, %v487
    %v489 = vsel %vm148, %v469, 0.0
    %v490 = vrot.slane %v489, 4
    %v491 = vadd.f32 %v489, %v490
    %v492 = vrot.slane %v491, 2
    %v493 = vadd.f32 %v491, %v492
    %v494 = vrot.slane %v493, 1
    %v495 = vadd.f32 %v493, %v494
    %v496 = vsel %vm148, %v470, 0.0
    %v497 = vrot.slane %v496, 4
    %v498 = vadd.f32 %v496, %v497
    %v499 = vrot.slane %v498, 2
    %v500 = vadd.f32 %v498, %v499
    %v501 = vrot.slane %v500, 1
    %v502 = vadd.f32 %v500, %v501
    %v503 = vsel %vm148, %v471, 0.0
    %v504 = vrot.slane %v503, 4
    %v505 = vadd.f32 %v503, %v504
    %v506 = vrot.slane %v505, 2
    %v507 = vadd.f32 %v505, %v506
    %v508 = vrot.slane %v507, 1
    %v509 = vadd.f32 %v507, %v508
    %v510 = vsel %vm148, %v472, 0.0
    %v511 = vrot.slane %v510, 4
    %v512 = vadd.f32 %v510, %v511
    %v513 = vrot.slane %v512, 2
    %v514 = vadd.f32 %v512, %v513
    %v515 = vrot.slane %v514, 1
    %v516 = vadd.f32 %v514, %v515
    %v517 = vsel %vm148, %v473, 0.0
    %v518 = vrot.slane %v517, 4
    %v519 = vadd.f32 %v517, %v518
    %v520 = vrot.slane %v519, 2
    %v521 = vadd.f32 %v519, %v520
    %v522 = vrot.slane %v521, 1
    %v523 = vadd.f32 %v521, %v522
    %v524 = vsel %vm148, %v474, 0.0
    %v525 = vrot.slane %v524, 4
    %v526 = vadd.f32 %v524, %v525
    %v527 = vrot.slane %v526, 2
    %v528 = vadd.f32 %v526, %v527
    %v529 = vrot.slane %v528, 1
    %v530 = vadd.f32 %v528, %v529
    %v531 = vlaneseq
    %v532 = vshrl.u32 %v531, 7
    %v533 = vsub.s32 %v182, %v532
    %v534 = vrot.slane %v430, %v533
    %v535 = vlaneseq
    %v536 = vshrl.u32 %v535, 7
    %v537 = vsub.s32 %v182, %v536
    %v538 = vrot.slane %v435, %v537
    %v539 = vlaneseq
    %v540 = vshrl.u32 %v539, 7
    %v541 = vsub.s32 %v182, %v540
    %v542 = vrot.slane %v440, %v541
    %v543 = vlaneseq
    %v544 = vshrl.u32 %v543, 7
    %v545 = vsub.s32 %v182, %v544
    %v546 = vrot.slane %v445, %v545
    %v547 = vlaneseq
    %v548 = vshrl.u32 %v547, 7
    %v549 = vsub.s32 %v182, %v548
    %v550 = vrot.slane %v450, %v549
    %v551 = vlaneseq
    %v552 = vshrl.u32 %v551, 7
    %v553 = vsub.s32 %v182, %v552
    %v554 = vrot.slane %v455, %v553
    %v555 = vlaneseq
    %v556 = vshrl.u32 %v555, 7
    %v557 = vsub.s32 %v182, %v556
    %v558 = vrot.slane %v460, %v557
    %v559 = vlaneseq
    %v560 = vshrl.u32 %v559, 7
    %v561 = vsub.s32 %v182, %v560
    %v562 = vrot.slane %v465, %v561
    %v563 = vsel %vm215, %v538, %v534
    %v564 = vsel %vm217, %v542, %v563
    %v565 = vsel %vm219, %v546, %v564
    %v566 = vsel %vm221, %v550, %v565
    %v567 = vsel %vm223, %v554, %v566
    %v568 = vsel %vm225, %v558, %v567
    %v569 = vsel %vm227, %v562, %v568
    %571 = vst.msk [vmem:[#allocation8] sm:$0xff] %vm230, %v569
    %v580 = vsel %vm215, %v488, %v481
    %v581 = vsel %vm217, %v495, %v580
    %v582 = vsel %vm219, %v502, %v581
    %v583 = vsel %vm221, %v509, %v582
    %v584 = vsel %vm223, %v516, %v583
    %v585 = vsel %vm225, %v523, %v584
    %v586 = vsel %vm227, %v530, %v585
    %588 = vst.msk [vmem:[#allocation7] sm:$0xff] %vm148, %v586
    // Predicated region
    $region18: #{tpu_custom_call.1} parent=1 // pred_check
      _
    $region19: #{tpu_custom_call.1} parent=1 // pred_check_branch
      %590 = sbr.rel (0) target = $region21
    $region20: #{tpu_custom_call.1} parent=1 // pred_region
      %s592 = ssub.s32 128, 128
      %593 = vsyncadd [#allocation4], %s592
      %s595 = sshll.u32 [#allocation7], 4
      %s596 = int_to_ptr.vmem [resolvable:$true] %s595
      %598 = dma.vmem_to_hbm [thread:$0]  %s596, 128, %s2, [#allocation4]
    $region21: #{tpu_custom_call.1} parent=1 // pred_fallthru
      _
    // Predicated region
    $region22: #{tpu_custom_call.1} parent=1 // pred_check
      _
    $region23: #{tpu_custom_call.1} parent=1 // pred_check_branch
      %600 = sbr.rel (0) target = $region25
    $region24: #{tpu_custom_call.1} parent=1 // pred_region
      %s602 = ssub.s32 128, 128
      %603 = vsyncadd [#allocation9], %s602
      %s605 = sshll.u32 [#allocation8], 4
      %s606 = int_to_ptr.vmem [resolvable:$true] %s605
      %608 = dma.vmem_to_hbm [thread:$0]  %s606, 128, %s3, [#allocation9]
    $region25: #{tpu_custom_call.1} parent=1 // pred_fallthru
      _
    // Predicated region
    $region26: #{tpu_custom_call.1} parent=1 // pred_check
      _
    $region27: #{tpu_custom_call.1} parent=1 // pred_check_branch
      %610 = sbr.rel (0) target = $region29
    $region28: #{tpu_custom_call.1} parent=1 // pred_region
      %611 = dma.done [#allocation4], 128
    $region29: #{tpu_custom_call.1} parent=1 // pred_fallthru
      _
    // Predicated region
    $region30: #{tpu_custom_call.1} parent=1 // pred_check
      _
    $region31: #{tpu_custom_call.1} parent=1 // pred_check_branch
      %613 = sbr.rel (0) target = $region33
    $region32: #{tpu_custom_call.1} parent=1 // pred_region
      %614 = dma.done [#allocation9], 128
    $region33: #{tpu_custom_call.1} parent=1 // pred_fallthru
      _
    %615 = vsyncpa [#allocation3], 1
    %616 = vsyncpa [#allocation6], 1
    %617 = vsyncpa [#allocation4], 1
    %618 = vsyncpa [#allocation9], 1

</llo_original>
